<compile_context>
chip_gen: v6e
topology: v6e:2x2x1
jax: 0.10.0
libtpu: 0.0.40
codegen_flags: <defaults>
</compile_context>

<pallas_src>
import functools

import jax
import jax.numpy as jnp
from jax import lax
from jax.experimental import pallas as pl
from jax.experimental.pallas import tpu as pltpu


# ---------------------------------------------------------------------------
# VMEM / tiling helpers
# ---------------------------------------------------------------------------

def _vmem_limit_bytes(nbytes_estimate):
    """Generation-aware scoped-VMEM limit: enough for this kernel's tiles plus
    headroom, never more than ~78% of physical VMEM (64 MiB v7x, 128 MiB
    v5e/v6e)."""
    cap = 128 * 1024 * 1024
    try:
        cap = int(getattr(pltpu.get_tpu_info(), "vmem_capacity_bytes", cap))
    except Exception:
        pass
    cap = int(cap * 0.78)                      # headroom for Mosaic scratch/sems
    want = max(32 * 1024 * 1024, int(1.25 * nbytes_estimate) + (4 << 20))
    return max(8 * 1024 * 1024, min(cap, want))


def _pick_tile(dim, preferred, align):
    """Largest divisor of `dim` <= `preferred` that is a multiple of `align`;
    falls back to the full dim (always a legal BlockSpec block size)."""
    if dim <= preferred:
        return dim
    t = (preferred // align) * align
    while t >= align:
        if dim % t == 0:
            return t
        t -= align
    return dim


# ---------------------------------------------------------------------------
# Fused per-(batch, head) qkv-projection + attention kernel.
#   x_ref   : (1, N, C)       activations (compute dtype)
#   w_ref   : (1, C, 3*D)     per-head [Wq | Wk | Wv] slab (compute dtype)
#   ctx_ref : (1, 1, N, D)    attention output for this head
#   wts_ref : (1, 1, N, N)    softmax weights for this head (exact)
# ---------------------------------------------------------------------------

def _attn_head_kernel(x_ref, w_ref, ctx_ref, wts_ref, *, head_dim, scale,
                      compute_dtype):
    D = head_dim
    qkv = jnp.dot(x_ref[0], w_ref[0],
                  preferred_element_type=jnp.float32)            # (N, 3D) f32

    q = (qkv[:, :D] * scale).astype(compute_dtype)               # (N, D)
    k = qkv[:, D:2 * D].astype(compute_dtype)                    # (N, D)
    v = qkv[:, 2 * D:].astype(compute_dtype)                     # (N, D)

    # scores: contract last dims of q and k (no explicit k.T / XLU transpose)
    s = lax.dot_general(q, k, (((1,), (1,)), ((), ())),
                        preferred_element_type=jnp.float32)      # (N, N) f32

    s = s - jnp.max(s, axis=-1, keepdims=True)                   # stable softmax
    e = jnp.exp(s)
    p = e / jnp.sum(e, axis=-1, keepdims=True)                   # exact (matches torch)

    wts_ref[0, 0] = p.astype(wts_ref.dtype)
    # attn_drop is identity at p=0.0 (eval semantics)
    o = jnp.dot(p.astype(compute_dtype), v, preferred_element_type=jnp.float32)
    ctx_ref[0, 0] = o.astype(ctx_ref.dtype)                      # (N, D)


def _fused_qkv_attention(x_c, w_qkvh, num_heads, head_dim, scale, *,
                         weights_dtype, ctx_dtype, compute_dtype):
    B, N, C = x_c.shape
    D = head_dim

    vmem = 2 * (N * C * x_c.dtype.itemsize
                + C * 3 * D * w_qkvh.dtype.itemsize
                + N * N * jnp.dtype(weights_dtype).itemsize
                + N * D * jnp.dtype(ctx_dtype).itemsize) \
           + 4 * N * N * 4                       # f32 softmax temporaries

    return pl.pallas_call(
        functools.partial(_attn_head_kernel, head_dim=D, scale=scale,
                          compute_dtype=compute_dtype),
        grid=(B, num_heads),
        in_specs=[pl.BlockSpec((1, N, C), lambda b, h: (b, 0, 0)),
                  pl.BlockSpec((1, C, 3 * D), lambda b, h: (h, 0, 0))],
        out_specs=(pl.BlockSpec((1, 1, N, D), lambda b, h: (b, h, 0, 0)),
                   pl.BlockSpec((1, 1, N, N), lambda b, h: (b, h, 0, 0))),
        out_shape=(jax.ShapeDtypeStruct((B, num_heads, N, D), ctx_dtype),
                   jax.ShapeDtypeStruct((B, num_heads, N, N), weights_dtype)),
        compiler_params=pltpu.CompilerParams(
            dimension_semantics=("parallel", "parallel"),
            vmem_limit_bytes=_vmem_limit_bytes(vmem),
        ),
    )(x_c, w_qkvh)


# ---------------------------------------------------------------------------
# Output projection GEMM: full-K tiles, 2-D parallel grid, bias fused.
# ---------------------------------------------------------------------------

def _linear_kernel(x_ref, w_ref, b_ref, o_ref, *, compute_dtype):
    acc = jnp.dot(x_ref[...].astype(compute_dtype),
                  w_ref[...].astype(compute_dtype),
                  preferred_element_type=jnp.float32)
    o_ref[...] = (acc + b_ref[...].astype(jnp.float32)).astype(o_ref.dtype)


def _linear(x2d, w, b, *, out_dtype, compute_dtype=jnp.bfloat16, tm=256, tn=256):
    """y = x2d @ w + b.  x2d: (M, K), w: (K, Nout), b: (1, Nout).
    Full-K tiles (ViT-sized K fits VMEM easily) -> no accumulator scratch and
    no reduction grid axis.  M is padded to the row tile (cdiv-style) instead
    of ballooning the tile to the full M."""
    M, K = x2d.shape
    K2, Nout = w.shape
    assert K == K2

    tm = min(tm, ((M + 15) // 16) * 16)          # 16-aligned (bf16-safe rows)
    Mp = ((M + tm - 1) // tm) * tm
    if Mp != M:
        x2d = jnp.pad(x2d, ((0, Mp - M), (0, 0)))
    tn = _pick_tile(Nout, tn, 128)
    grid = (Mp // tm, Nout // tn)

    vmem = 2 * (tm * K * x2d.dtype.itemsize
                + K * tn * w.dtype.itemsize
                + tn * b.dtype.itemsize
                + tm * tn * jnp.dtype(out_dtype).itemsize) + tm * tn * 4

    out = pl.pallas_call(
        functools.partial(_linear_kernel, compute_dtype=compute_dtype),
        grid=grid,
        in_specs=[pl.BlockSpec((tm, K), lambda i, j: (i, 0)),
                  pl.BlockSpec((K, tn), lambda i, j: (0, j)),
                  pl.BlockSpec((1, tn), lambda i, j: (0, j))],
        out_specs=pl.BlockSpec((tm, tn), lambda i, j: (i, j)),
        out_shape=jax.ShapeDtypeStruct((Mp, Nout), out_dtype),
        compiler_params=pltpu.CompilerParams(
            dimension_semantics=("parallel", "parallel"),
            vmem_limit_bytes=_vmem_limit_bytes(vmem),
        ),
    )(x2d, w, b)
    return out[:M] if Mp != M else out


# ---------------------------------------------------------------------------
# Forward pass (matches Attention.forward; q/k_norm are Identity, dropouts p=0)
# ---------------------------------------------------------------------------

def attention_forward(x, w_qkv, w_proj, b_proj, num_heads, *,
                      compute_dtype=jnp.bfloat16):
    """Returns (projected_output, attention_weights)."""
    B, N, C = x.shape
    H = num_heads
    D = C // H
    scale = D ** (-0.5)

    # One-time parameter prep (constant-foldable for inference weights):
    # head-major qkv weight slab (H, C, 3*D) so each grid step DMAs one
    # contiguous, lane-aligned (C, 3D) block; stored once in the MXU dtype.
    w_qkvh = jnp.transpose(w_qkv.reshape(C, 3, H, D), (2, 0, 1, 3)) \
                .reshape(H, C, 3 * D).astype(compute_dtype)
    w_proj_c = w_proj.astype(compute_dtype)
    x_c = x.astype(compute_dtype)               # activation cast once, halves DMA

    ctx, weights = _fused_qkv_attention(
        x_c, w_qkvh, H, D, scale,
        weights_dtype=x.dtype,                  # exact softmax, module dtype
        ctx_dtype=compute_dtype, compute_dtype=compute_dtype)

    # (attn @ v).transpose(1, 2).reshape(B, N, C): tiny rearrangement done in
    # the wrapper — the kernel already wrote lane-aligned (N, D) head blocks.
    ctx2d = jnp.transpose(ctx, (0, 2, 1, 3)).reshape(B * N, C)

    # output projection (+bias); proj_drop is identity at p=0.0.
    y = _linear(ctx2d, w_proj_c, b_proj.reshape(1, C),
                out_dtype=x.dtype, compute_dtype=compute_dtype)
    return y.reshape(B, N, C), weights


# ---------------------------------------------------------------------------
# Driver
# ---------------------------------------------------------------------------

if __name__ == "__main__":
    B, N, C = 2, 8, 64
    num_heads = 8
    head_dim = C // num_heads
    scale = head_dim ** (-0.5)

    key = jax.random.PRNGKey(0)
    kx, kqkv, kpw, kpb = jax.random.split(key, 4)

    # Deterministic synthetic parameters (shapes from Attention.__init__,
    # weights in (in, out) math layout).
    x = jax.random.normal(kx, (B, N, C), dtype=jnp.float32)
    w_qkv = jax.random.normal(kqkv, (C, 3 * C), dtype=jnp.float32) * 0.02  # qkv_bias=False
    w_proj = jax.random.normal(kpw, (C, C), dtype=jnp.float32) * 0.02
    b_proj = jax.random.normal(kpb, (C,), dtype=jnp.float32) * 0.02

    fwd = jax.jit(attention_forward, static_argnames=("num_heads",))
    out, weight = fwd(x, w_qkv, w_proj, b_proj, num_heads=num_heads)
    out, weight = jax.block_until_ready((out, weight))

    # Pure-JAX f32 reference (same math as the PyTorch forward).
    qkv_ref = (x.reshape(B * N, C) @ w_qkv).reshape(B, N, 3, num_heads, head_dim)
    qkv_ref = qkv_ref.transpose(2, 0, 3, 1, 4)
    q, k, v = qkv_ref[0], qkv_ref[1], qkv_ref[2]
    attn_ref = jax.nn.softmax((q * scale) @ jnp.swapaxes(k, -2, -1), axis=-1)
    out_ref = (attn_ref @ v).transpose(0, 2, 1, 3).reshape(B, N, C) @ w_proj + b_proj

    assert out.shape == (B, N, C) and weight.shape == (B, num_heads, N, N)
    # bf16 MXU inputs + bf16 context intermediate -> bf16-appropriate tolerances.
    assert jnp.allclose(out, out_ref, atol=2e-2, rtol=2e-2), \
        float(jnp.max(jnp.abs(out - out_ref)))
    assert jnp.allclose(weight, attn_ref, atol=5e-3, rtol=5e-3), \
        float(jnp.max(jnp.abs(weight - attn_ref)))

    print("KERNEL_OK")
</pallas_src>

<mosaic_0001>
module attributes {stable_mosaic.version = 11 : i64} {
  func.func @_attn_head_kernel(%arg0: i32, %arg1: i32, %arg2: memref<1x8x64xbf16, #tpu.memory_space<vmem>>, %arg3: memref<1x64x24xbf16, #tpu.memory_space<vmem>>, %arg4: memref<1x1x8x8xbf16, #tpu.memory_space<vmem>>, %arg5: memref<1x1x8x8xf32, #tpu.memory_space<vmem>>) attributes {dimension_semantics = [#tpu.dimension_semantics<parallel>, #tpu.dimension_semantics<parallel>], iteration_bounds = array<i64: 2, 8>, scalar_prefetch = 0 : i64, scratch_operands = 0 : i64, tpu.core_type = #tpu.core_type<tc>, window_params = [{transform_indices = @transform_0, window_bounds = array<i64: 1, 8, 64>}, {transform_indices = @transform_1, window_bounds = array<i64: 1, 64, 24>}, {transform_indices = @transform_2, window_bounds = array<i64: 1, 1, 8, 8>}, {transform_indices = @transform_3, window_bounds = array<i64: 1, 1, 8, 8>}]} {
    %c0 = arith.constant 0 : index
    %c0_0 = arith.constant 0 : index
    %c0_1 = arith.constant 0 : index
    %0 = vector.load %arg2[%c0, %c0_0, %c0_1] : memref<1x8x64xbf16, #tpu.memory_space<vmem>>, vector<1x8x64xbf16>
    %1 = vector.shape_cast %0 : vector<1x8x64xbf16> to vector<8x64xbf16>
    %c0_2 = arith.constant 0 : index
    %c0_3 = arith.constant 0 : index
    %c0_4 = arith.constant 0 : index
    %2 = vector.load %arg3[%c0_2, %c0_3, %c0_4] : memref<1x64x24xbf16, #tpu.memory_space<vmem>>, vector<1x64x24xbf16>
    %3 = vector.shape_cast %2 : vector<1x64x24xbf16> to vector<64x24xbf16>
    %cst = arith.constant dense<0.000000e+00> : vector<8x24xf32>
    %4 = tpu.matmul %1, %3, %cst {dimension_numbers = #tpu.dot_dimension_numbers<[1], [0], [0], [1], [0, 0, 1, 1], [], []>} : vector<8x64xbf16>, vector<64x24xbf16>, vector<8x24xf32> -> vector<8x24xf32>
    %5 = vector.extract_strided_slice %4 {offsets = [0, 0], sizes = [8, 8], strides = [1, 1]} : vector<8x24xf32> to vector<8x8xf32>
    %cst_5 = arith.constant 0.353553385 : f32
    %6 = vector.broadcast %cst_5 : f32 to vector<8x8xf32>
    %7 = arith.mulf %5, %6 : vector<8x8xf32>
    %8 = arith.truncf %7 : vector<8x8xf32> to vector<8x8xbf16>
    %9 = vector.extract_strided_slice %4 {offsets = [0, 8], sizes = [8, 8], strides = [1, 1]} : vector<8x24xf32> to vector<8x8xf32>
    %10 = arith.truncf %9 : vector<8x8xf32> to vector<8x8xbf16>
    %11 = vector.extract_strided_slice %4 {offsets = [0, 16], sizes = [8, 8], strides = [1, 1]} : vector<8x24xf32> to vector<8x8xf32>
    %12 = arith.truncf %11 : vector<8x8xf32> to vector<8x8xbf16>
    %cst_6 = arith.constant dense<0.000000e+00> : vector<8x8xf32>
    %13 = tpu.matmul %8, %10, %cst_6 {dimension_numbers = #tpu.dot_dimension_numbers<[1], [1], [0], [0], [0, 0, 1, 0], [], []>} : vector<8x8xbf16>, vector<8x8xbf16>, vector<8x8xf32> -> vector<8x8xf32>
    %cst_7 = arith.constant dense<0xFF800000> : vector<8xf32>
    %14 = vector.multi_reduction <maximumf>, %13, %cst_7 [1] : vector<8x8xf32> to vector<8xf32>
    %15 = vector.shape_cast %14 : vector<8xf32> to vector<8x1xf32>
    %16 = vector.broadcast %15 : vector<8x1xf32> to vector<8x8xf32>
    %17 = arith.subf %13, %16 : vector<8x8xf32>
    %18 = math.exp %17 : vector<8x8xf32>
    %cst_8 = arith.constant dense<0.000000e+00> : vector<8xf32>
    %19 = vector.multi_reduction <add>, %18, %cst_8 [1] : vector<8x8xf32> to vector<8xf32>
    %20 = vector.shape_cast %19 : vector<8xf32> to vector<8x1xf32>
    %21 = vector.broadcast %20 : vector<8x1xf32> to vector<8x8xf32>
    %22 = arith.divf %18, %21 : vector<8x8xf32>
    %c0_9 = arith.constant 0 : index
    %c0_10 = arith.constant 0 : index
    %c0_11 = arith.constant 0 : index
    %c0_12 = arith.constant 0 : index
    %23 = vector.load %arg5[%c0_9, %c0_10, %c0_11, %c0_12] : memref<1x1x8x8xf32, #tpu.memory_space<vmem>>, vector<1x1x8x8xf32>
    %24 = vector.shape_cast %23 : vector<1x1x8x8xf32> to vector<8x8xf32>
    %25 = vector.shape_cast %22 : vector<8x8xf32> to vector<1x1x8x8xf32>
    tpu.vector_store %arg5[%c0_9, %c0_10, %c0_11, %c0_12], %25 {strides = array<i32>} : memref<1x1x8x8xf32, #tpu.memory_space<vmem>>, vector<1x1x8x8xf32>,
    %26 = arith.truncf %22 : vector<8x8xf32> to vector<8x8xbf16>
    %cst_13 = arith.constant dense<0.000000e+00> : vector<8x8xf32>
    %27 = tpu.matmul %26, %12, %cst_13 {dimension_numbers = #tpu.dot_dimension_numbers<[1], [0], [0], [1], [0, 0, 1, 1], [], []>} : vector<8x8xbf16>, vector<8x8xbf16>, vector<8x8xf32> -> vector<8x8xf32>
    %28 = arith.truncf %27 : vector<8x8xf32> to vector<8x8xbf16>
    %c0_14 = arith.constant 0 : index
    %c0_15 = arith.constant 0 : index
    %c0_16 = arith.constant 0 : index
    %c0_17 = arith.constant 0 : index
    %29 = vector.load %arg4[%c0_14, %c0_15, %c0_16, %c0_17] : memref<1x1x8x8xbf16, #tpu.memory_space<vmem>>, vector<1x1x8x8xbf16>
    %30 = vector.shape_cast %29 : vector<1x1x8x8xbf16> to vector<8x8xbf16>
    %31 = vector.shape_cast %28 : vector<8x8xbf16> to vector<1x1x8x8xbf16>
    tpu.vector_store %arg4[%c0_14, %c0_15, %c0_16, %c0_17], %31 {strides = array<i32>} : memref<1x1x8x8xbf16, #tpu.memory_space<vmem>>, vector<1x1x8x8xbf16>,
    return
  }
  func.func @transform_0(%arg0: i32, %arg1: i32) -> (i32, i32, i32) {
    %c0_i32 = arith.constant 0 : i32
    %c0_i32_0 = arith.constant 0 : i32
    %c0_i32_1 = arith.constant 0 : i32
    return %arg0, %c0_i32, %c0_i32_0 : i32, i32, i32
  }
  func.func @transform_1(%arg0: i32, %arg1: i32) -> (i32, i32, i32) {
    %c0_i32 = arith.constant 0 : i32
    %c0_i32_0 = arith.constant 0 : i32
    %c0_i32_1 = arith.constant 0 : i32
    return %arg1, %c0_i32, %c0_i32_0 : i32, i32, i32
  }
  func.func @transform_2(%arg0: i32, %arg1: i32) -> (i32, i32, i32, i32) {
    %c0_i32 = arith.constant 0 : i32
    %c0_i32_0 = arith.constant 0 : i32
    %c0_i32_1 = arith.constant 0 : i32
    return %arg0, %arg1, %c0_i32, %c0_i32_0 : i32, i32, i32, i32
  }
  func.func @transform_3(%arg0: i32, %arg1: i32) -> (i32, i32, i32, i32) {
    %c0_i32 = arith.constant 0 : i32
    %c0_i32_0 = arith.constant 0 : i32
    %c0_i32_1 = arith.constant 0 : i32
    return %arg0, %arg1, %c0_i32, %c0_i32_0 : i32, i32, i32, i32
  }
}

module attributes {stable_mosaic.version = 11 : i64} {
  func.func @_linear_kernel(%arg0: i32, %arg1: i32, %arg2: memref<16x64xbf16, #tpu.memory_space<vmem>>, %arg3: memref<64x64xbf16, #tpu.memory_space<vmem>>, %arg4: memref<1x64xf32, #tpu.memory_space<vmem>>, %arg5: memref<16x64xf32, #tpu.memory_space<vmem>>) attributes {dimension_semantics = [#tpu.dimension_semantics<parallel>, #tpu.dimension_semantics<parallel>], iteration_bounds = array<i64: 1, 1>, scalar_prefetch = 0 : i64, scratch_operands = 0 : i64, tpu.core_type = #tpu.core_type<tc>, window_params = [{transform_indices = @transform_0, window_bounds = array<i64: 16, 64>}, {transform_indices = @transform_1, window_bounds = array<i64: 64, 64>}, {transform_indices = @transform_2, window_bounds = array<i64: 1, 64>}, {transform_indices = @transform_3, window_bounds = array<i64: 16, 64>}]} {
    %c0 = arith.constant 0 : index
    %c0_0 = arith.constant 0 : index
    %0 = vector.load %arg2[%c0, %c0_0] : memref<16x64xbf16, #tpu.memory_space<vmem>>, vector<16x64xbf16>
    %c0_1 = arith.constant 0 : index
    %c0_2 = arith.constant 0 : index
    %1 = vector.load %arg3[%c0_1, %c0_2] : memref<64x64xbf16, #tpu.memory_space<vmem>>, vector<64x64xbf16>
    %cst = arith.constant dense<0.000000e+00> : vector<16x64xf32>
    %2 = tpu.matmul %0, %1, %cst {dimension_numbers = #tpu.dot_dimension_numbers<[1], [0], [0], [1], [0, 0, 1, 1], [], []>} : vector<16x64xbf16>, vector<64x64xbf16>, vector<16x64xf32> -> vector<16x64xf32>
    %c0_3 = arith.constant 0 : index
    %c0_4 = arith.constant 0 : index
    %3 = vector.load %arg4[%c0_3, %c0_4] : memref<1x64xf32, #tpu.memory_space<vmem>>, vector<1x64xf32>
    %4 = vector.broadcast %3 : vector<1x64xf32> to vector<16x64xf32>
    %5 = arith.addf %2, %4 : vector<16x64xf32>
    %c0_5 = arith.constant 0 : index
    %c0_6 = arith.constant 0 : index
    %6 = vector.load %arg5[%c0_5, %c0_6] : memref<16x64xf32, #tpu.memory_space<vmem>>, vector<16x64xf32>
    tpu.vector_store %arg5[%c0_5, %c0_6], %5 {strides = array<i32>} : memref<16x64xf32, #tpu.memory_space<vmem>>, vector<16x64xf32>,
    return
  }
  func.func @transform_0(%arg0: i32, %arg1: i32) -> (i32, i32) {
    %c0_i32 = arith.constant 0 : i32
    %c0_i32_0 = arith.constant 0 : i32
    return %arg0, %c0_i32 : i32, i32
  }
  func.func @transform_1(%arg0: i32, %arg1: i32) -> (i32, i32) {
    %c0_i32 = arith.constant 0 : i32
    %c0_i32_0 = arith.constant 0 : i32
    return %c0_i32, %arg1 : i32, i32
  }
  func.func @transform_2(%arg0: i32, %arg1: i32) -> (i32, i32) {
    %c0_i32 = arith.constant 0 : i32
    %c0_i32_0 = arith.constant 0 : i32
    return %c0_i32, %arg1 : i32, i32
  }
  func.func @transform_3(%arg0: i32, %arg1: i32) -> (i32, i32) {
    %c0_i32 = arith.constant 0 : i32
    return %arg0, %arg1 : i32, i32
  }
}

</mosaic_0001>

<llo_original>
// kernel: attention_forward.3
$region0: #{attention_forward.3}
  #allocation0 [shape = 'u32[]', space=smem, size = 0x4, offset = 0x4, fixed_abs, tag = 'smem constant byte address 0x4 - core index']
  #allocation1 [shape = 'u32[144,128]{1,0:T(1,128)}', space=vmem, size = 0x12000, scoped, tag = 'internal scratch']
  %s0 = inlined_call_operand.vmem [shape: bf16[16,64], index: 0, kind: input, shape index: {}]
  %s1 = inlined_call_operand.vmem [shape: bf16[64,64], index: 1, kind: input, shape index: {}]
  %s2 = inlined_call_operand.vmem [shape: f32[1,64], index: 2, kind: input, shape index: {}]
  %s3 = inlined_call_operand.hbm [shape: f32[16,64], index: 3, kind: output, shape index: {}]
  %s4 = sld [smem:[#allocation0]]
  $region22: #{attention_forward.3} parent=0
    _
  %s6 = ssub.s32 1, %s4
  %s7 = scalar_select 0, %s6, %s4
  $region1: #{attention_forward.3} parent=0
    #allocation2 [shape = 'u8[8192]{0}', space=vmem, size = 0x2000, scoped, tag = 'output window, operand 0, single buffered']
    #allocation3 [shape = 's32[1]{0}', space=sflag, size = 0x4, scoped, tag = 'scoped memory for attention_forward.3']
    %8 = vsyncpa [#allocation3], 0
    // Predicated region
    $region2: #{attention_forward.3} parent=1 // pred_check
      _
    $region3: #{attention_forward.3} parent=1 // pred_check_branch
      %10 = sbr.rel (0) target = $region5
    $region4: #{attention_forward.3} parent=1 // pred_region
      _
    $region5: #{attention_forward.3} parent=1 // pred_fallthru
      _
    // Predicated region
    $region6: #{attention_forward.3} parent=1 // pred_check
      _
    $region7: #{attention_forward.3} parent=1 // pred_check_branch
      %12 = sbr.rel (0) target = $region9
    $region8: #{attention_forward.3} parent=1 // pred_region
      _
    $region9: #{attention_forward.3} parent=1 // pred_fallthru
      _
    // Predicated region
    $region10: #{attention_forward.3} parent=1 // pred_check
      _
    $region11: #{attention_forward.3} parent=1 // pred_check_branch
      %14 = sbr.rel (0) target = $region13
    $region12: #{attention_forward.3} parent=1 // pred_region
      _
    $region13: #{attention_forward.3} parent=1 // pred_fallthru
      _
    %v16 = vld [vmem:[%s0] sm:$0xf]
    %v17 = vld [vmem:[%s0 + $0x4] sm:$0xf]
    %v18 = vld [vmem:[%s1] sm:$0xf]
    %v19 = vld [vmem:[%s1 + $0x4] sm:$0xf]
    %v20 = vld [vmem:[%s1 + $0x8] sm:$0xf]
    %v21 = vld [vmem:[%s1 + $0xc] sm:$0xf]
    %v22 = vld [vmem:[%s1 + $0x10] sm:$0xf]
    %v23 = vld [vmem:[%s1 + $0x14] sm:$0xf]
    %v24 = vld [vmem:[%s1 + $0x18] sm:$0xf]
    %v25 = vld [vmem:[%s1 + $0x1c] sm:$0xf]
    %v26 = vld [vmem:[%s2] sm:$0x1]
    %v28 = vlaneseq
    %v29 = vshrl.u32 %v28, 7
    %v30 = vsub.s32 0, %v29
    %v31 = vrot.slane %v26, %v30
    %v35 = vunpack.c.l.b16 %v16
    %v36 = vunpack.c.l.b16 %v17
    %v37 = vpack.c.b16 %v36, %v35
    %v46 = vunpack.c.l.b16 %v18
    %v47 = vunpack.c.l.b16 %v19
    %v48 = vunpack.c.l.b16 %v20
    %v49 = vunpack.c.l.b16 %v21
    %v50 = vunpack.c.l.b16 %v22
    %v51 = vunpack.c.l.b16 %v23
    %v52 = vunpack.c.l.b16 %v24
    %v53 = vunpack.c.l.b16 %v25
    %v54 = vpack.c.b16 %v47, %v46
    %v55 = vpack.c.b16 %v49, %v48
    %v56 = vpack.c.b16 %v51, %v50
    %v57 = vpack.c.b16 %v53, %v52
    %vm62 = vcmask 523264
    %v64 = vsel %vm62, %v37, 0
    %66 = vmatprep.subr.bf16.mxu0 0
    %67 = vmatpush1.bf16.msra.mxu0 0
    %68 = vmatprep.subr.bf16.mxu0 0
    %69 = vmatpush1.bf16.msra.mxu0 0
    %70 = vmatprep.subr.bf16.mxu0 0
    %71 = vmatpush1.bf16.msra.mxu0 0
    %72 = vmatprep.subr.bf16.mxu0 0
    %73 = vmatpush1.bf16.msra.mxu0 0
    %74 = vmatprep.subr.bf16.mxu0 0
    %75 = vmatpush1.bf16.msra.mxu0 %v57
    %76 = vmatprep.subr.bf16.mxu0 0
    %77 = vmatpush1.bf16.msra.mxu0 %v56
    %78 = vmatprep.subr.bf16.mxu0 0
    %79 = vmatpush1.bf16.msra.mxu0 %v55
    %80 = vmatprep.subr.bf16.mxu0 0
    %81 = vmatpush1.bf16.msra.mxu0 %v54
    %82 = vmatprep.subr.bf16.mxu0 0
    %83 = vmatpush2.bf16.msra.mxu0 0
    %84 = vmatprep.subr.bf16.mxu0 0
    %85 = vmatpush2.bf16.msra.mxu0 0
    %86 = vmatprep.subr.bf16.mxu0 0
    %87 = vmatpush2.bf16.msra.mxu0 0
    %88 = vmatprep.subr.bf16.mxu0 0
    %89 = vmatpush2.bf16.msra.mxu0 0
    %90 = vmatprep.subr.bf16.mxu0 0
    %91 = vmatpush2.bf16.msra.mxu0 0
    %92 = vmatprep.subr.bf16.mxu0 0
    %93 = vmatpush2.bf16.msra.mxu0 0
    %94 = vmatprep.subr.bf16.mxu0 0
    %95 = vmatpush2.bf16.msra.mxu0 0
    %96 = vmatprep.subr.bf16.mxu0 0
    %97 = vmatpush2.bf16.msra.mxu0 0
    %98 = vmatprep.mubr.bf16.mxu0 0
    %99 = vmatmul.mubr.bf16.gmra.mxu0 %v64
    %v100 = vpop.f32.mrf.mxu0
    %v101 = vadd.f32 %v31, %v100
    %v102 = vpop.f32.mrf.mxu0
    %v103 = vpop.f32.mrf.mxu0
    %v104 = vadd.f32 %v31, %v103
    %v105 = vpop.f32.mrf.mxu0
    %106 = vdwg.mxu0
    %107 = vst.msk [vmem:[#allocation2] sm:$0xff] %vm62, %v101
    %108 = vst.msk [vmem:[#allocation2 + $0x8] sm:$0xff] %vm62, %v104
    // Predicated region
    $region14: #{attention_forward.3} parent=1 // pred_check
      _
    $region15: #{attention_forward.3} parent=1 // pred_check_branch
      %110 = sbr.rel (0) target = $region17
    $region16: #{attention_forward.3} parent=1 // pred_region
      %s112 = ssub.s32 256, 256
      %113 = vsyncadd [#allocation3], %s112
      %s114 = sshll.u32 [#allocation2], 4
      %s115 = int_to_ptr.vmem [resolvable:$true] %s114
      %120 = dma.vmem_to_hbm [thread:$0]  %s115, 256, %s3, [#allocation3], 128, 128, 8
    $region17: #{attention_forward.3} parent=1 // pred_fallthru
      _
    // Predicated region
    $region18: #{attention_forward.3} parent=1 // pred_check
      _
    $region19: #{attention_forward.3} parent=1 // pred_check_branch
      %122 = sbr.rel (0) target = $region21
    $region20: #{attention_forward.3} parent=1 // pred_region
      %123 = dma.done [#allocation3], 256
    $region21: #{attention_forward.3} parent=1 // pred_fallthru
      _
    %124 = vsyncpa [#allocation3], 1

// kernel: attention_forward.2
$region0: #{attention_forward.2}
  #allocation0 [shape = 'u32[]', space=smem, size = 0x4, offset = 0x4, fixed_abs, tag = 'smem constant byte address 0x4 - core index']
  #allocation1 [shape = 'u32[144,128]{1,0:T(1,128)}', space=vmem, size = 0x12000, scoped, tag = 'internal scratch']
  %s0 = inlined_call_operand.vmem [shape: bf16[2,8,64], index: 0, kind: input, shape index: {}]
  %s1 = inlined_call_operand.vmem [shape: bf16[8,64,24], index: 1, kind: input, shape index: {}]
  %s2 = inlined_call_operand.vmem [shape: bf16[2,8,8,8], index: 2, kind: output, shape index: {0}]
  %s3 = inlined_call_operand.hbm [shape: f32[2,8,8,8], index: 3, kind: output, shape index: {1}]
  %4 = xla_tuple %s2, %s3
  %s5 = sld [smem:[#allocation0]]
  $region49: #{attention_forward.2} parent=0
    _
  %s7 = ssub.s32 1, %s5
  %s8 = scalar_select 0, %s7, %s5
  $region1: #{attention_forward.2} parent=0
    #allocation2 [shape = 'u8[8192]{0}', space=vmem, size = 0x2000, scoped, tag = 'output window, operand 1']
    #allocation3 [shape = 's32[2]{0}', space=sflag, size = 0x8, scoped, tag = 'scoped memory for attention_forward.2']
    %9 = vsyncpa [#allocation3], 0
    %s10 = scalar_lea.sflag [#allocation3], 1
    %11 = vsyncpa %s10, 0
    loop: start=0, step=1, limit=18
    $region2: #{attention_forward.2} parent=1 // loop_pre_header
      _
    $region3: #{attention_forward.2} parent=1 // loop_header
      %s13 = sphi 0, %s17
      %p14 = scmp.ge.s32.totalorder %s13, 18
      %s20 = sphi 0, %s32
      %s21 = sphi 0, %s28
      %s22 = sphi 0, %s20
      %s23 = sphi 0, %s21
      %s24 = sphi 0, %s22
      %s25 = sphi 0, %s23
      %s35 = sphi 0, %s37
      %s38 = sphi 0, %s35
      %s39 = sphi 0, %s38
      %s55 = sphi 0, %s39
      %s61 = sphi 0, %s63
      %s64 = sphi 0, %s61
      %s65 = sphi 0, %s64
      %s81 = sphi 0, %s65
      %s89 = sphi 0, %s91
      %s92 = sphi 0, %s89
      %s93 = sphi 0, %s92
      %s109 = sphi 0, %s93
      %s117 = sphi 0, %s119
      %s120 = sphi 0, %s117
      %s121 = sphi 0, %s120
      %s137 = sphi 0, %s121
    $region4: #{attention_forward.2} parent=1 // loop_header_branch
      %16 = sbr.rel (%p14) target = $region8
    $region5: #{attention_forward.2} parent=1 // loop_body
      %s18 = ssub.s32 %s13, 1
      %s19 = ssub.s32 %s13, 2
      %s26 = sadd.s32 1, %s21
      %p27 = scmp.ge.s32.totalorder %s26, 8
      %s28 = scalar_select %p27, 0, %s26
      %s29 = sadd.s32 1, %s20
      %s30 = scalar_select %p27, %s29, %s20
      %p31 = scmp.ge.s32.totalorder %s30, 2
      %s32 = scalar_select %p31, 0, %s30
      %s33 = ssub.s32 %s20, %s32
      %p34 = scmp.eq.s32.totalorder %s33, 0
      %s36 = sadd.s32 %s35, 1
      %s37 = scalar_select %p34, %s35, %s36
      %p40 = pneg %p34
      %p41 = scmp.eq.s32.totalorder %s13, 15
      %p42 = por %p40, %p41
      %p43 = scmp.ne.s32.totalorder %s35, %s38
      %p44 = scmp.eq.s32.totalorder %s13, 0
      %p45 = por %p43, %p44
      %p46 = scmp.ne.s32.totalorder %s35, %s38
      %p47 = scmp.eq.s32.totalorder %s18, 15
      %p48 = por %p46, %p47
      %p49 = scmp.ne.s32.totalorder %s38, %s39
      %p50 = scmp.eq.s32.totalorder %s18, 0
      %p51 = por %p49, %p50
      %p52 = scmp.ne.s32.totalorder %s38, %s39
      %p53 = scmp.eq.s32.totalorder %s19, 15
      %p54 = por %p52, %p53
      %p56 = scmp.ne.s32.totalorder %s39, %s55
      %p57 = scmp.eq.s32.totalorder %s19, 0
      %p58 = por %p56, %p57
      %s59 = ssub.s32 %s21, %s28
      %p60 = scmp.eq.s32.totalorder %s59, 0
      %s62 = sadd.s32 %s61, 1
      %s63 = scalar_select %p60, %s61, %s62
      %p66 = pneg %p60
      %p67 = scmp.eq.s32.totalorder %s13, 15
      %p68 = por %p66, %p67
      %p69 = scmp.ne.s32.totalorder %s61, %s64
      %p70 = scmp.eq.s32.totalorder %s13, 0
      %p71 = por %p69, %p70
      %p72 = scmp.ne.s32.totalorder %s61, %s64
      %p73 = scmp.eq.s32.totalorder %s18, 15
      %p74 = por %p72, %p73
      %p75 = scmp.ne.s32.totalorder %s64, %s65
      %p76 = scmp.eq.s32.totalorder %s18, 0
      %p77 = por %p75, %p76
      %p78 = scmp.ne.s32.totalorder %s64, %s65
      %p79 = scmp.eq.s32.totalorder %s19, 15
      %p80 = por %p78, %p79
      %p82 = scmp.ne.s32.totalorder %s65, %s81
      %p83 = scmp.eq.s32.totalorder %s19, 0
      %p84 = por %p82, %p83
      %s85 = ssub.s32 %s20, %s32
      %s86 = ssub.s32 %s21, %s28
      %s87 = sor.u32 %s85, %s86
      %p88 = scmp.eq.s32.totalorder %s87, 0
      %s90 = sadd.s32 %s89, 1
      %s91 = scalar_select %p88, %s89, %s90
      %p94 = pneg %p88
      %p95 = scmp.eq.s32.totalorder %s13, 15
      %p96 = por %p94, %p95
      %p97 = scmp.ne.s32.totalorder %s89, %s92
      %p98 = scmp.eq.s32.totalorder %s13, 0
      %p99 = por %p97, %p98
      %p100 = scmp.ne.s32.totalorder %s89, %s92
      %p101 = scmp.eq.s32.totalorder %s18, 15
      %p102 = por %p100, %p101
      %p103 = scmp.ne.s32.totalorder %s92, %s93
      %p104 = scmp.eq.s32.totalorder %s18, 0
      %p105 = por %p103, %p104
      %p106 = scmp.ne.s32.totalorder %s92, %s93
      %p107 = scmp.eq.s32.totalorder %s19, 15
      %p108 = por %p106, %p107
      %p110 = scmp.ne.s32.totalorder %s93, %s109
      %p111 = scmp.eq.s32.totalorder %s19, 0
      %p112 = por %p110, %p111
      %s113 = ssub.s32 %s20, %s32
      %s114 = ssub.s32 %s21, %s28
      %s115 = sor.u32 %s113, %s114
      %p116 = scmp.eq.s32.totalorder %s115, 0
      %s118 = sadd.s32 %s117, 1
      %s119 = scalar_select %p116, %s117, %s118
      %p122 = pneg %p116
      %p123 = scmp.eq.s32.totalorder %s13, 15
      %p124 = por %p122, %p123
      %p125 = scmp.ne.s32.totalorder %s117, %s120
      %p126 = scmp.eq.s32.totalorder %s13, 0
      %p127 = por %p125, %p126
      %p128 = scmp.ne.s32.totalorder %s117, %s120
      %p129 = scmp.eq.s32.totalorder %s18, 15
      %p130 = por %p128, %p129
      %p131 = scmp.ne.s32.totalorder %s120, %s121
      %p132 = scmp.eq.s32.totalorder %s18, 0
      %p133 = por %p131, %p132
      %p134 = scmp.ne.s32.totalorder %s120, %s121
      %p135 = scmp.eq.s32.totalorder %s19, 15
      %p136 = por %p134, %p135
      %p138 = scmp.ne.s32.totalorder %s121, %s137
      %p139 = scmp.eq.s32.totalorder %s19, 0
      %p140 = por %p138, %p139
      %p141 = scmp.le.s32.totalorder 1, %s13
      %p142 = scmp.lt.s32.totalorder %s13, 17
      %p143 = pnand %p141, %p142
      %p144 = pneg %p143
      // Predicated region
      $region9: #{attention_forward.2} parent=5 // pred_check
        _
      $region10: #{attention_forward.2} parent=5 // pred_check_branch
        %146 = sbr.rel (%p143) target = $region12
      $region11: #{attention_forward.2} parent=5 // pred_region
        %s147 = ssub.s32 %s13, 1
      $region12: #{attention_forward.2} parent=5 // pred_fallthru
        _
      %p148 = scmp.lt.s32.totalorder %s13, 16
      // Predicated region
      $region13: #{attention_forward.2} parent=5 // pred_check
        %p149 = pneg %p148
      $region14: #{attention_forward.2} parent=5 // pred_check_branch
        %151 = sbr.rel (%p149) target = $region16
      $region15: #{attention_forward.2} parent=5 // pred_region
        // Predicated region
        $region17: #{attention_forward.2} parent=15 // pred_check
          %p152 = pneg %p45
        $region18: #{attention_forward.2} parent=15 // pred_check_branch
          %154 = sbr.rel (%p152) target = $region20
        $region19: #{attention_forward.2} parent=15 // pred_region
          %p155 = scmp.lt.s32.totalorder %s20, 1
          %s156 = scalar_select %p155, %s20, 1
          %s157 = smul.addr %s156, 4
          %s158 = scalar_lea.vmem %s0, %s157
        $region20: #{attention_forward.2} parent=15 // pred_fallthru
          _
        // Predicated region
        $region21: #{attention_forward.2} parent=15 // pred_check
          %p159 = pneg %p71
        $region22: #{attention_forward.2} parent=15 // pred_check_branch
          %161 = sbr.rel (%p159) target = $region24
        $region23: #{attention_forward.2} parent=15 // pred_region
          %p162 = scmp.lt.s32.totalorder %s21, 7
          %s163 = scalar_select %p162, %s21, 7
          %s164 = smul.addr %s163, 8
          %s165 = smul.addr %s164, 4
          %s166 = scalar_lea.vmem %s1, %s165
        $region24: #{attention_forward.2} parent=15 // pred_fallthru
          _
      $region16: #{attention_forward.2} parent=5 // pred_fallthru
        _
      %p167 = scmp.le.s32.totalorder 1, %s13
      %p168 = scmp.lt.s32.totalorder %s13, 17
      %p169 = pnand %p167, %p168
      %p170 = pneg %p169
      // Predicated region
      $region25: #{attention_forward.2} parent=5 // pred_check
        _
      $region26: #{attention_forward.2} parent=5 // pred_check_branch
        %172 = sbr.rel (%p169) target = $region28
      $region27: #{attention_forward.2} parent=5 // pred_region
        %s173 = ssub.s32 %s13, 1
        %p174 = scmp.lt.s32.totalorder %s22, 1
        %s175 = scalar_select %p174, %s22, 1
        %s176 = smul.addr %s175, 4
        %s177 = scalar_lea.vmem %s0, %s176
        %p178 = pneg %p51
        %p179 = pneg %p48
        %p180 = scmp.lt.s32.totalorder %s23, 7
        %s181 = scalar_select %p180, %s23, 7
        %s182 = smul.addr %s181, 8
        %s183 = smul.addr %s182, 4
        %s184 = scalar_lea.vmem %s1, %s183
        %p185 = pneg %p77
        %p186 = pneg %p74
        %p187 = pneg %p105
        %p188 = pneg %p102
        %p189 = scmp.lt.s32.totalorder %s22, 1
        %s190 = scalar_select %p189, %s22, 1
        %p191 = scmp.lt.s32.totalorder %s23, 7
        %s192 = scalar_select %p191, %s23, 7
        %s193 = smul.addr %s190, 8
        %s194 = sadd.s32 %s192, %s193
        %s195 = smul.addr %s194, 4
        %s196 = scalar_lea.vmem %s2, %s195
        %p197 = pneg %p133
        %p198 = pneg %p130
        %s199 = sand.u32 %s120, 1
        %s200 = scalar_lea.sflag [#allocation3], %s199
        %s201 = sand.u32 %s120, 1
        %s202 = smul.addr %s201, 8
        %s203 = scalar_lea.vmem [#allocation2], %s202
        %p204 = scmp.lt.s32.totalorder %s22, 1
        %s205 = scalar_select %p204, %s22, 1
        %s206 = smul.addr %s205, 4
        %s207 = scalar_lea.vmem %s0, %s206
        %p208 = scmp.lt.s32.totalorder %s23, 7
        %s209 = scalar_select %p208, %s23, 7
        %s210 = smul.addr %s209, 8
        %s211 = smul.addr %s210, 4
        %s212 = scalar_lea.vmem %s1, %s211
        %p213 = scmp.lt.s32.totalorder %s22, 1
        %s214 = scalar_select %p213, %s22, 1
        %p215 = scmp.lt.s32.totalorder %s23, 7
        %s216 = scalar_select %p215, %s23, 7
        %s217 = smul.addr %s214, 8
        %s218 = sadd.s32 %s216, %s217
        %s219 = smul.addr %s218, 4
        %s220 = scalar_lea.vmem %s2, %s219
        %v222 = vld [vmem:[%s207] sm:$0xf]
        %v223 = vld [vmem:[%s212] sm:$0xf]
        %v224 = vld [vmem:[%s212 + $0x4] sm:$0xf]
        %v225 = vld [vmem:[%s212 + $0x8] sm:$0xf]
        %v226 = vld [vmem:[%s212 + $0xc] sm:$0xf]
        %v227 = vld [vmem:[%s212 + $0x10] sm:$0xf]
        %v228 = vld [vmem:[%s212 + $0x14] sm:$0xf]
        %v229 = vld [vmem:[%s212 + $0x18] sm:$0xf]
        %v230 = vld [vmem:[%s212 + $0x1c] sm:$0xf]
        %v239 = vunpack.c.l.b16 %v223
        %v240 = vunpack.c.l.b16 %v224
        %v241 = vunpack.c.l.b16 %v225
        %v242 = vunpack.c.l.b16 %v226
        %v243 = vunpack.c.l.b16 %v227
        %v244 = vunpack.c.l.b16 %v228
        %v245 = vunpack.c.l.b16 %v229
        %v246 = vunpack.c.l.b16 %v230
        %v247 = vpack.c.b16 %v240, %v239
        %v248 = vpack.c.b16 %v242, %v241
        %v249 = vpack.c.b16 %v244, %v243
        %v250 = vpack.c.b16 %v246, %v245
        %vm255 = vcmask 523264
        %v257 = vsel %vm255, %v222, 0
        %259 = vmatprep.subr.bf16.mxu0 0
        %260 = vmatpush1.bf16.msra.mxu0 0
        %261 = vmatprep.subr.bf16.mxu0 0
        %262 = vmatpush1.bf16.msra.mxu0 0
        %263 = vmatprep.subr.bf16.mxu0 0
        %264 = vmatpush1.bf16.msra.mxu0 0
        %265 = vmatprep.subr.bf16.mxu0 0
        %266 = vmatpush1.bf16.msra.mxu0 0
        %267 = vmatprep.subr.bf16.mxu0 0
        %268 = vmatpush1.bf16.msra.mxu0 %v250
        %269 = vmatprep.subr.bf16.mxu0 0
        %270 = vmatpush1.bf16.msra.mxu0 %v249
        %271 = vmatprep.subr.bf16.mxu0 0
        %272 = vmatpush1.bf16.msra.mxu0 %v248
        %273 = vmatprep.subr.bf16.mxu0 0
        %274 = vmatpush1.bf16.msra.mxu0 %v247
        %275 = vmatprep.subr.bf16.mxu0 0
        %276 = vmatpush2.bf16.msra.mxu0 0
        %277 = vmatprep.subr.bf16.mxu0 0
        %278 = vmatpush2.bf16.msra.mxu0 0
        %279 = vmatprep.subr.bf16.mxu0 0
        %280 = vmatpush2.bf16.msra.mxu0 0
        %281 = vmatprep.subr.bf16.mxu0 0
        %282 = vmatpush2.bf16.msra.mxu0 0
        %283 = vmatprep.subr.bf16.mxu0 0
        %284 = vmatpush2.bf16.msra.mxu0 0
        %285 = vmatprep.subr.bf16.mxu0 0
        %286 = vmatpush2.bf16.msra.mxu0 0
        %287 = vmatprep.subr.bf16.mxu0 0
        %288 = vmatpush2.bf16.msra.mxu0 0
        %289 = vmatprep.subr.bf16.mxu0 0
        %290 = vmatpush2.bf16.msra.mxu0 0
        %291 = vmatprep.mubr.bf16.mxu0 0
        %292 = vmatmul.mubr.bf16.gmra.mxu0 %v257
        %v293 = vpop.f32.mrf.mxu0
        %v294 = vadd.f32 0.0, %v293
        %v295 = vpop.f32.mrf.mxu0
        %v296 = vpop.f32.mrf.mxu0
        %v297 = vpop.f32.mrf.mxu0
        %298 = vdwg.mxu0
        %v299 = vmul.f32 %v294, 0.35355338
        %v300 = vpack.c.bf16 %v299, %v299
        %v301 = vpack.c.bf16 %v294, %v294
        %303 = vrot.lane.b32.xlu0 %v301, 120
        %v304 = vpop.permute.xlu0 %303
        %vm305 = vcmask 64512
        %v307 = vsel %vm305, %v300, 0
        %v310 = vsel %vm305, %v304, 0
        %312 = vmatprep.subr.bf16.mxu0 0
        %313 = vmatpush1.bf16.xpose.msra.mxu0 0
        %314 = vmatprep.subr.bf16.mxu0 0
        %315 = vmatpush1.bf16.xpose.msra.mxu0 0
        %316 = vmatprep.subr.bf16.mxu0 0
        %317 = vmatpush1.bf16.xpose.msra.mxu0 0
        %318 = vmatprep.subr.bf16.mxu0 0
        %319 = vmatpush1.bf16.xpose.msra.mxu0 0
        %320 = vmatprep.subr.bf16.mxu0 0
        %321 = vmatpush1.bf16.xpose.msra.mxu0 0
        %322 = vmatprep.subr.bf16.mxu0 0
        %323 = vmatpush1.bf16.xpose.msra.mxu0 0
        %324 = vmatprep.subr.bf16.mxu0 0
        %325 = vmatpush1.bf16.xpose.msra.mxu0 0
        %326 = vmatprep.subr.bf16.mxu0 0
        %327 = vmatpush1.bf16.xpose.msra.mxu0 %v310
        %328 = vmatprep.subr.bf16.mxu0 0
        %329 = vmatpush2.bf16.xpose.msra.mxu0 0
        %330 = vmatprep.subr.bf16.mxu0 0
        %331 = vmatpush2.bf16.xpose.msra.mxu0 0
        %332 = vmatprep.subr.bf16.mxu0 0
        %333 = vmatpush2.bf16.xpose.msra.mxu0 0
        %334 = vmatprep.subr.bf16.mxu0 0
        %335 = vmatpush2.bf16.xpose.msra.mxu0 0
        %336 = vmatprep.subr.bf16.mxu0 0
        %337 = vmatpush2.bf16.xpose.msra.mxu0 0
        %338 = vmatprep.subr.bf16.mxu0 0
        %339 = vmatpush2.bf16.xpose.msra.mxu0 0
        %340 = vmatprep.subr.bf16.mxu0 0
        %341 = vmatpush2.bf16.xpose.msra.mxu0 0
        %342 = vmatprep.subr.bf16.mxu0 0
        %343 = vmatpush2.bf16.xpose.msra.mxu0 0
        %344 = vmatprep.mubr.bf16.mxu0 0
        %345 = vmatmul.mubr.bf16.gmra.mxu0 %v307
        %v346 = vpop.f32.mrf.mxu0
        %v347 = vadd.f32 0.0, %v346
        %v348 = vpop.f32.mrf.mxu0
        %v349 = vpop.f32.mrf.mxu0
        %v350 = vpop.f32.mrf.mxu0
        %351 = vdwg.mxu0
        %v352 = vsel %vm305, %v347, -inf
        %353 = vmax.xlane.f32.xlu0 %v352
        %v354 = vpop.xlane.xlu0 %353
        %v355 = vsub.f32 %v347, %v354
        %v356 = vmul.f32 %v355, 1.442695
        %v357 = vpow.pop %v356
        %v358 = vsel %vm305, %v357, 0.0
        %359 = vadd.xlane.f32.xlu0 %v358
        %v360 = vpop.xlane.xlu0 %359
        %v361 = vrcp.pop %v360
        %v362 = vmul.f32 %v357, %v361
        %363 = vst.msk [vmem:[%s203] sm:$0xff] %vm305, %v362
        %v364 = vpack.c.bf16 %v362, %v362
        %365 = vrot.lane.b32.xlu0 %v301, 112
        %v366 = vpop.permute.xlu0 %365
        %v368 = vsel %vm305, %v364, 0
        %vm370 = vcmask 1043456
        %v372 = vsel %vm370, %v366, 0
        %374 = vmatprep.subr.bf16.mxu0 0
        %375 = vmatpush1.bf16.msra.mxu0 0
        %376 = vmatprep.subr.bf16.mxu0 0
        %377 = vmatpush1.bf16.msra.mxu0 0
        %378 = vmatprep.subr.bf16.mxu0 0
        %379 = vmatpush1.bf16.msra.mxu0 0
        %380 = vmatprep.subr.bf16.mxu0 0
        %381 = vmatpush1.bf16.msra.mxu0 0
        %382 = vmatprep.subr.bf16.mxu0 0
        %383 = vmatpush1.bf16.msra.mxu0 0
        %384 = vmatprep.subr.bf16.mxu0 0
        %385 = vmatpush1.bf16.msra.mxu0 0
        %386 = vmatprep.subr.bf16.mxu0 0
        %387 = vmatpush1.bf16.msra.mxu0 0
        %388 = vmatprep.subr.bf16.mxu0 0
        %389 = vmatpush1.bf16.msra.mxu0 %v372
        %390 = vmatprep.subr.bf16.mxu0 0
        %391 = vmatpush2.bf16.msra.mxu0 0
        %392 = vmatprep.subr.bf16.mxu0 0
        %393 = vmatpush2.bf16.msra.mxu0 0
        %394 = vmatprep.subr.bf16.mxu0 0
        %395 = vmatpush2.bf16.msra.mxu0 0
        %396 = vmatprep.subr.bf16.mxu0 0
        %397 = vmatpush2.bf16.msra.mxu0 0
        %398 = vmatprep.subr.bf16.mxu0 0
        %399 = vmatpush2.bf16.msra.mxu0 0
        %400 = vmatprep.subr.bf16.mxu0 0
        %401 = vmatpush2.bf16.msra.mxu0 0
        %402 = vmatprep.subr.bf16.mxu0 0
        %403 = vmatpush2.bf16.msra.mxu0 0
        %404 = vmatprep.subr.bf16.mxu0 0
        %405 = vmatpush2.bf16.msra.mxu0 0
        %406 = vmatprep.mubr.bf16.mxu0 0
        %407 = vmatmul.mubr.bf16.gmra.mxu0 %v368
        %v408 = vpop.f32.mrf.mxu0
        %v409 = vadd.f32 0.0, %v408
        %v410 = vpop.f32.mrf.mxu0
        %v411 = vpop.f32.mrf.mxu0
        %v412 = vpop.f32.mrf.mxu0
        %413 = vdwg.mxu0
        %v414 = vpack.c.bf16 %v409, %v409
        %vm415 = vcmask 60416
        %416 = vst.msk [vmem:[%s220] sm:$0xf] %vm415, %v414
        %p417 = scmp.lt.s32.totalorder %s22, 1
        %s418 = scalar_select %p417, %s22, 1
        %p419 = scmp.lt.s32.totalorder %s23, 7
        %s420 = scalar_select %p419, %s23, 7
        %s421 = smul.addr %s418, 8
        %s422 = sadd.s32 %s420, %s421
        %s423 = smul.addr %s422, 4
        %s424 = scalar_lea.vmem %s2, %s423
        %s425 = sand.u32 %s120, 1
        %s426 = scalar_lea.sflag [#allocation3], %s425
        %s427 = sand.u32 %s120, 1
        %s428 = smul.addr %s427, 8
        %s429 = scalar_lea.vmem [#allocation2], %s428
        // Predicated region
        $region29: #{attention_forward.2} parent=27 // pred_check
          %p430 = pneg %p102
        $region30: #{attention_forward.2} parent=27 // pred_check_branch
          %432 = sbr.rel (%p430) target = $region32
        $region31: #{attention_forward.2} parent=27 // pred_region
          _
        $region32: #{attention_forward.2} parent=27 // pred_fallthru
          _
        // Predicated region
        $region33: #{attention_forward.2} parent=27 // pred_check
          %p433 = pneg %p130
        $region34: #{attention_forward.2} parent=27 // pred_check_branch
          %435 = sbr.rel (%p433) target = $region36
        $region35: #{attention_forward.2} parent=27 // pred_region
          %s437 = ssub.s32 128, 128
          %438 = vsyncadd %s426, %s437
          %s439 = smul.addr %s22, 8
          %s440 = sadd.s32 %s23, %s439
          %s441 = smul.addr %s440, 128
          %s442 = scalar_lea.hbm %s3, %s441
          %s444 = sshll.u32 %s429, 4
          %s445 = int_to_ptr.vmem [resolvable:$true] %s444
          %447 = dma.vmem_to_hbm [thread:$0]  %s445, 128, %s442, %s426
        $region36: #{attention_forward.2} parent=27 // pred_fallthru
          _
      $region28: #{attention_forward.2} parent=5 // pred_fallthru
        _
      %p448 = scmp.le.s32.totalorder 2, %s13
      // Predicated region
      $region37: #{attention_forward.2} parent=5 // pred_check
        %p449 = pneg %p448
      $region38: #{attention_forward.2} parent=5 // pred_check_branch
        %451 = sbr.rel (%p449) target = $region40
      $region39: #{attention_forward.2} parent=5 // pred_region
        %s452 = ssub.s32 %s13, 2
        // Predicated region
        $region41: #{attention_forward.2} parent=39 // pred_check
          %p453 = pneg %p108
        $region42: #{attention_forward.2} parent=39 // pred_check_branch
          %455 = sbr.rel (%p453) target = $region44
        $region43: #{attention_forward.2} parent=39 // pred_region
          %p456 = scmp.lt.s32.totalorder %s24, 1
          %s457 = scalar_select %p456, %s24, 1
          %p458 = scmp.lt.s32.totalorder %s25, 7
          %s459 = scalar_select %p458, %s25, 7
          %s460 = smul.addr %s457, 8
          %s461 = sadd.s32 %s459, %s460
          %s462 = smul.addr %s461, 4
          %s463 = scalar_lea.vmem %s2, %s462
        $region44: #{attention_forward.2} parent=39 // pred_fallthru
          _
        // Predicated region
        $region45: #{attention_forward.2} parent=39 // pred_check
          %p464 = pneg %p136
        $region46: #{attention_forward.2} parent=39 // pred_check_branch
          %466 = sbr.rel (%p464) target = $region48
        $region47: #{attention_forward.2} parent=39 // pred_region
          %s467 = sand.u32 %s121, 1
          %s468 = scalar_lea.sflag [#allocation3], %s467
          %s469 = sand.u32 %s121, 1
          %s470 = smul.addr %s469, 8
          %s471 = scalar_lea.vmem [#allocation2], %s470
          %472 = dma.done %s468, 128
        $region48: #{attention_forward.2} parent=39 // pred_fallthru
          _
      $region40: #{attention_forward.2} parent=5 // pred_fallthru
        _
    $region6: #{attention_forward.2} parent=1 // loop_footer
      %s17 = sadd.s32 1, %s13
    $region7: #{attention_forward.2} parent=1 // loop_footer_branch
      %12 = sbr.rel target = $region3
    $region8: #{attention_forward.2} parent=1 // loop_exit
      _
    %473 = vsyncpa [#allocation3], 1
    %s474 = scalar_lea.sflag [#allocation3], 1
    %475 = vsyncpa %s474, 1

</llo_original>
